<compile_context>
chip_gen: v5e
topology: v5e:2x2
jax: 0.10.0
libtpu: 0.0.40
codegen_flags: <defaults>
</compile_context>

<pallas_src>
import functools

import jax
import jax.numpy as jnp
from jax.experimental import pallas as pl
from jax.experimental.pallas import tpu as pltpu


def _round_up(n, m):
    return (n + m - 1) // m * m


def _partial_sum(z_ref, zp_ref, mean, logvar_pre, out_ref, *, batch, tile_b):
    """Shared tail: simplified CLUB bound for one batch tile -> per-tile partial sum."""
    log_variance = jnp.tanh(logvar_pre)                                # EUP
    inv_var = jnp.exp(-log_variance)                                   # EUP
    z = z_ref[...]
    zp = zp_ref[...]
    # positive - negative == (z - zp) * (2*mean - z - zp) * exp(-logvar)
    d = z - zp
    elem = d * (2.0 * mean - z - zp) * inv_var
    row_sum = jnp.sum(elem, axis=-1, keepdims=True)                    # (tile_b, 1)
    # zero-mask padded rows (already exactly 0 since z/zp pad to 0, but keep it explicit)
    row_id = pl.program_id(0) * tile_b + jax.lax.broadcasted_iota(
        jnp.int32, (tile_b, 1), 0)
    row_sum = jnp.where(row_id < batch, row_sum, 0.0)
    tile_sum = jnp.sum(row_sum)
    out_ref[...] = jnp.full(out_ref.shape, tile_sum, jnp.float32)


def _club_kernel_fused(x_ref, z_ref, zp_ref, w1_ref, b1_ref, w2_ref, b2_ref,
                       out_ref, *, batch, dz, tile_b):
    """Layer-2 fused as one block-diagonal matmul (only used when 2*Dz <= 128)."""
    # Layer 1: x @ [w1m | w1v] -> (tile_b, 2H), ReLU   (bf16 operands, f32 acc)
    h = jnp.dot(x_ref[...], w1_ref[...],
                preferred_element_type=jnp.float32) + b1_ref[...]
    h = jnp.maximum(h, 0.0)
    # Layer 2: h @ blockdiag(w2m, w2v) -> (tile_b, 2Dz) = [mean | logvar_pre]
    y = jnp.dot(h.astype(jnp.bfloat16), w2_ref[...],
                preferred_element_type=jnp.float32) + b2_ref[...]
    _partial_sum(z_ref, zp_ref, y[:, :dz], y[:, dz:], out_ref,
                 batch=batch, tile_b=tile_b)


def _club_kernel_split(x_ref, z_ref, zp_ref, w1_ref, b1_ref, w2m_ref, w2v_ref,
                       b2_ref, out_ref, *, batch, hidden, dz, tile_b):
    """Layer-2 as two dots sharing the fused layer-1 activation (2*Dz > 128)."""
    h = jnp.dot(x_ref[...], w1_ref[...],
                preferred_element_type=jnp.float32) + b1_ref[...]
    h = jnp.maximum(h, 0.0)
    b2 = b2_ref[...]
    mean = jnp.dot(h[:, :hidden].astype(jnp.bfloat16), w2m_ref[...],
                   preferred_element_type=jnp.float32) + b2[:, :dz]
    logvar_pre = jnp.dot(h[:, hidden:].astype(jnp.bfloat16), w2v_ref[...],
                         preferred_element_type=jnp.float32) + b2[:, dz:]
    _partial_sum(z_ref, zp_ref, mean, logvar_pre, out_ref,
                 batch=batch, tile_b=tile_b)


@jax.jit
def club_forward(x, z, perm, params):
    """CLUB forward.  `perm` plays the role of torch.randperm(len(x))."""
    B, Dx = x.shape
    _, Dz = z.shape
    H = params["w1m"].shape[1]

    # Block-diagonal layer-2 fusion only when it fits a single MXU push.
    fuse_w2 = (2 * Dz) <= 128

    # ---- Tile sizing against a cross-generation VMEM budget --------------------
    # Budget well below v7x's 64 MiB physical VMEM; v5e/v6e have 128 MiB.
    VMEM_BUDGET = 40 * 1024 * 1024
    w2_bytes = ((2 * H) * (2 * Dz) * 2) if fuse_w2 else (2 * H * Dz * 2)
    # resident weights (double-buffered by BlockSpec) + sublane-padded biases
    weight_bytes = 2 * (Dx * (2 * H) * 2 + w2_bytes + 8 * (2 * H) * 4 + 8 * (2 * Dz) * 4)

    def blocks_bytes(tb):
        # x (bf16) + z + z_perm (f32) tiles, double-buffered, plus the output block
        return 2 * (tb * Dx * 2 + 2 * tb * Dz * 4) + 2 * 8 * 128 * 4

    tile_b = min(1024, _round_up(B, 16))
    while tile_b > 16 and weight_bytes + blocks_bytes(tile_b) > VMEM_BUDGET:
        tile_b -= 16
    b_pad = _round_up(B, tile_b)
    num_tiles = b_pad // tile_b

    vmem_limit = int(min(56 * 1024 * 1024,
                         max(16 * 1024 * 1024,
                             2 * (weight_bytes + blocks_bytes(tile_b)) + (1 << 20))))

    # ---- Fuse layer-1 of the two estimators; fuse biases ------------------------
    w1f = jnp.concatenate([params["w1m"], params["w1v"]], axis=1).astype(jnp.bfloat16)
    b1f = jnp.concatenate([params["b1m"], params["b1v"]], axis=1).astype(jnp.float32)
    b2f = jnp.concatenate([params["b2m"], params["b2v"]], axis=1).astype(jnp.float32)

    # ---- Wrapper-side permutation gather (exact, f32) ---------------------------
    z32 = z.astype(jnp.float32)
    zp32 = jnp.take(z32, perm.astype(jnp.int32), axis=0)
    xb = x.astype(jnp.bfloat16)   # bf16 MXU operand -> halves HBM traffic for x
    if b_pad != B:
        pad = b_pad - B
        xb = jnp.pad(xb, ((0, pad), (0, 0)))
        z32 = jnp.pad(z32, ((0, pad), (0, 0)))
        zp32 = jnp.pad(zp32, ((0, pad), (0, 0)))

    data_specs = [
        pl.BlockSpec((tile_b, Dx), lambda i: (i, 0)),   # x tile (bf16)
        pl.BlockSpec((tile_b, Dz), lambda i: (i, 0)),   # z tile (f32)
        pl.BlockSpec((tile_b, Dz), lambda i: (i, 0)),   # z_perm tile (f32)
    ]
    w_common_specs = [
        pl.BlockSpec((Dx, 2 * H), lambda i: (0, 0)),    # fused layer-1 weight (resident)
        pl.BlockSpec((1, 2 * H), lambda i: (0, 0)),     # fused layer-1 bias
    ]

    if fuse_w2:
        zeros_hd = jnp.zeros((H, Dz), jnp.float32)
        w2f = jnp.concatenate(
            [jnp.concatenate([params["w2m"], zeros_hd], axis=1),
             jnp.concatenate([zeros_hd, params["w2v"]], axis=1)], axis=0
        ).astype(jnp.bfloat16)
        kernel = functools.partial(_club_kernel_fused, batch=B, dz=Dz, tile_b=tile_b)
        weight_args = (w1f, b1f, w2f, b2f)
        weight_specs = w_common_specs + [
            pl.BlockSpec((2 * H, 2 * Dz), lambda i: (0, 0)),   # block-diag layer-2 weight
            pl.BlockSpec((1, 2 * Dz), lambda i: (0, 0)),       # fused layer-2 bias
        ]
    else:
        kernel = functools.partial(_club_kernel_split, batch=B, hidden=H, dz=Dz,
                                   tile_b=tile_b)
        weight_args = (w1f, b1f,
                       params["w2m"].astype(jnp.bfloat16),
                       params["w2v"].astype(jnp.bfloat16),
                       b2f)
        weight_specs = w_common_specs + [
            pl.BlockSpec((H, Dz), lambda i: (0, 0)),           # layer-2 mean weight
            pl.BlockSpec((H, Dz), lambda i: (0, 0)),           # layer-2 logvar weight
            pl.BlockSpec((1, 2 * Dz), lambda i: (0, 0)),       # fused layer-2 bias
        ]

    partial_sums = pl.pallas_call(
        kernel,
        out_shape=jax.ShapeDtypeStruct((num_tiles, 8, 128), jnp.float32),
        grid_spec=pltpu.PrefetchScalarGridSpec(
            num_scalar_prefetch=0,
            grid=(num_tiles,),
            in_specs=data_specs + weight_specs,
            # Per-tile partial sums: each grid step owns its own (1, 8, 128) block,
            # so the batch axis can be sharded across TensorCores ("parallel").
            out_specs=pl.BlockSpec((1, 8, 128), lambda i: (i, 0, 0)),
        ),
        compiler_params=pltpu.CompilerParams(
            dimension_semantics=("parallel",),
            vmem_limit_bytes=vmem_limit,
        ),
    )(xb, z32, zp32, *weight_args)

    # Final reduction + mean over the TRUE batch size, divided by 2.
    return jnp.sum(partial_sums[:, 0, 0]) * (0.5 / B)


def init_params(key, dx, dz, hidden):
    """Deterministic synthetic parameter init (matches the estimator shapes)."""
    ks = jax.random.split(key, 8)
    scale1 = 1.0 / jnp.sqrt(dx)
    scale2 = 1.0 / jnp.sqrt(hidden)
    return {
        "w1m": jax.random.normal(ks[0], (dx, hidden), jnp.float32) * scale1,
        "b1m": jax.random.normal(ks[1], (1, hidden), jnp.float32) * 0.01,
        "w2m": jax.random.normal(ks[2], (hidden, dz), jnp.float32) * scale2,
        "b2m": jax.random.normal(ks[3], (1, dz), jnp.float32) * 0.01,
        "w1v": jax.random.normal(ks[4], (dx, hidden), jnp.float32) * scale1,
        "b1v": jax.random.normal(ks[5], (1, hidden), jnp.float32) * 0.01,
        "w2v": jax.random.normal(ks[6], (hidden, dz), jnp.float32) * scale2,
        "b2v": jax.random.normal(ks[7], (1, dz), jnp.float32) * 0.01,
    }


def reference_forward_bf16(x, z, perm, p):
    """Pure-JAX reference with the SAME bf16 matmul operands as the kernel."""
    bf, f32 = jnp.bfloat16, jnp.float32
    xb = x.astype(bf)
    h_m = jnp.maximum(jnp.dot(xb, p["w1m"].astype(bf), preferred_element_type=f32) + p["b1m"], 0.0)
    mean = jnp.dot(h_m.astype(bf), p["w2m"].astype(bf), preferred_element_type=f32) + p["b2m"]
    h_v = jnp.maximum(jnp.dot(xb, p["w1v"].astype(bf), preferred_element_type=f32) + p["b1v"], 0.0)
    logvar = jnp.tanh(jnp.dot(h_v.astype(bf), p["w2v"].astype(bf), preferred_element_type=f32) + p["b2v"])
    z_perm = z[perm]
    inv_var = jnp.exp(-logvar)
    pos = -(mean - z) ** 2 * inv_var
    neg = -(mean - z_perm) ** 2 * inv_var
    return (pos.sum(-1) - neg.sum(-1)).mean() / 2.0


def reference_forward_f32(x, z, perm, p):
    """Full-f32 reference of the original module (informational)."""
    h_m = jnp.maximum(x @ p["w1m"] + p["b1m"], 0.0)
    mean = h_m @ p["w2m"] + p["b2m"]
    h_v = jnp.maximum(x @ p["w1v"] + p["b1v"], 0.0)
    logvar = jnp.tanh(h_v @ p["w2v"] + p["b2v"])
    z_perm = z[perm]
    pos = -(mean - z) ** 2 / jnp.exp(logvar)
    neg = -(mean - z_perm) ** 2 / jnp.exp(logvar)
    return (pos.sum(-1) - neg.sum(-1)).mean() / 2.0


if __name__ == "__main__":
    # TODO(synk): estimators are assumed to be Linear->ReLU->Linear (mean) and
    # Linear->ReLU->Linear->Tanh (log-variance); torch.randperm is replaced by a
    # JAX permutation generated in glue code and consumed via a wrapper gather.
    def run_case(B, Dx, Dz, H, case_key):
        kx, kz, kp, kparam = jax.random.split(case_key, 4)
        x = jax.random.normal(kx, (B, Dx), jnp.float32)
        z = jax.random.normal(kz, (B, Dz), jnp.float32)
        perm = jax.random.permutation(kp, B)
        params = init_params(kparam, Dx, Dz, H)
        out = club_forward(x, z, perm, params)
        jax.block_until_ready(out)
        ref = reference_forward_bf16(x, z, perm, params)
        ref_f32 = reference_forward_f32(x, z, perm, params)
        assert jnp.allclose(out, ref, atol=2e-3, rtol=2e-3), (out, ref, ref_f32)
        return out

    key = jax.random.PRNGKey(0)
    k1, k2 = jax.random.split(key)
    run_case(8, 32, 32, 32, k1)     # fused block-diagonal layer-2 path (2*Dz <= 128)
    run_case(8, 32, 128, 32, k2)    # split layer-2 path (2*Dz > 128)

    print("KERNEL_OK")
</pallas_src>

<mosaic_0001>
module attributes {stable_mosaic.version = 11 : i64} {
  func.func @_club_kernel_fused(%arg0: i32, %arg1: memref<16x32xbf16, #tpu.memory_space<vmem>>, %arg2: memref<16x32xf32, #tpu.memory_space<vmem>>, %arg3: memref<16x32xf32, #tpu.memory_space<vmem>>, %arg4: memref<32x64xbf16, #tpu.memory_space<vmem>>, %arg5: memref<1x64xf32, #tpu.memory_space<vmem>>, %arg6: memref<64x64xbf16, #tpu.memory_space<vmem>>, %arg7: memref<1x64xf32, #tpu.memory_space<vmem>>, %arg8: memref<1x8x128xf32, #tpu.memory_space<vmem>>) attributes {dimension_semantics = [#tpu.dimension_semantics<parallel>], iteration_bounds = array<i64: 1>, scalar_prefetch = 0 : i64, scratch_operands = 0 : i64, tpu.core_type = #tpu.core_type<tc>, window_params = [{transform_indices = @transform_0, window_bounds = array<i64: 16, 32>}, {transform_indices = @transform_1, window_bounds = array<i64: 16, 32>}, {transform_indices = @transform_2, window_bounds = array<i64: 16, 32>}, {pipeline_mode = #tpu.pipeline_mode<synchronous>, transform_indices = @transform_3, window_bounds = array<i64: 32, 64>}, {pipeline_mode = #tpu.pipeline_mode<synchronous>, transform_indices = @transform_4, window_bounds = array<i64: 1, 64>}, {pipeline_mode = #tpu.pipeline_mode<synchronous>, transform_indices = @transform_5, window_bounds = array<i64: 64, 64>}, {pipeline_mode = #tpu.pipeline_mode<synchronous>, transform_indices = @transform_6, window_bounds = array<i64: 1, 64>}, {transform_indices = @transform_7, window_bounds = array<i64: 1, 8, 128>}]} {
    %c0 = arith.constant 0 : index
    %c0_0 = arith.constant 0 : index
    %0 = vector.load %arg1[%c0, %c0_0] : memref<16x32xbf16, #tpu.memory_space<vmem>>, vector<16x32xbf16>
    %c0_1 = arith.constant 0 : index
    %c0_2 = arith.constant 0 : index
    %1 = vector.load %arg4[%c0_1, %c0_2] : memref<32x64xbf16, #tpu.memory_space<vmem>>, vector<32x64xbf16>
    %cst = arith.constant dense<0.000000e+00> : vector<16x64xf32>
    %2 = tpu.matmul %0, %1, %cst {dimension_numbers = #tpu.dot_dimension_numbers<[1], [0], [0], [1], [0, 0, 1, 1], [], []>} : vector<16x32xbf16>, vector<32x64xbf16>, vector<16x64xf32> -> vector<16x64xf32>
    %c0_3 = arith.constant 0 : index
    %c0_4 = arith.constant 0 : index
    %3 = vector.load %arg5[%c0_3, %c0_4] : memref<1x64xf32, #tpu.memory_space<vmem>>, vector<1x64xf32>
    %4 = vector.broadcast %3 : vector<1x64xf32> to vector<16x64xf32>
    %5 = arith.addf %2, %4 : vector<16x64xf32>
    %cst_5 = arith.constant 0.000000e+00 : f32
    %6 = vector.broadcast %cst_5 : f32 to vector<16x64xf32>
    %7 = arith.maximumf %5, %6 : vector<16x64xf32>
    %8 = arith.truncf %7 : vector<16x64xf32> to vector<16x64xbf16>
    %c0_6 = arith.constant 0 : index
    %c0_7 = arith.constant 0 : index
    %9 = vector.load %arg6[%c0_6, %c0_7] : memref<64x64xbf16, #tpu.memory_space<vmem>>, vector<64x64xbf16>
    %cst_8 = arith.constant dense<0.000000e+00> : vector<16x64xf32>
    %10 = tpu.matmul %8, %9, %cst_8 {dimension_numbers = #tpu.dot_dimension_numbers<[1], [0], [0], [1], [0, 0, 1, 1], [], []>} : vector<16x64xbf16>, vector<64x64xbf16>, vector<16x64xf32> -> vector<16x64xf32>
    %c0_9 = arith.constant 0 : index
    %c0_10 = arith.constant 0 : index
    %11 = vector.load %arg7[%c0_9, %c0_10] : memref<1x64xf32, #tpu.memory_space<vmem>>, vector<1x64xf32>
    %12 = vector.broadcast %11 : vector<1x64xf32> to vector<16x64xf32>
    %13 = arith.addf %10, %12 : vector<16x64xf32>
    %14 = vector.extract_strided_slice %13 {offsets = [0, 0], sizes = [16, 32], strides = [1, 1]} : vector<16x64xf32> to vector<16x32xf32>
    %15 = vector.extract_strided_slice %13 {offsets = [0, 32], sizes = [16, 32], strides = [1, 1]} : vector<16x64xf32> to vector<16x32xf32>
    %16 = math.tanh %15 : vector<16x32xf32>
    %cst_11 = arith.constant 0.000000e+00 : f32
    %17 = vector.broadcast %cst_11 : f32 to vector<16x32xf32>
    %18 = arith.subf %17, %16 : vector<16x32xf32>
    %19 = math.exp %18 : vector<16x32xf32>
    %c0_12 = arith.constant 0 : index
    %c0_13 = arith.constant 0 : index
    %20 = vector.load %arg2[%c0_12, %c0_13] : memref<16x32xf32, #tpu.memory_space<vmem>>, vector<16x32xf32>
    %c0_14 = arith.constant 0 : index
    %c0_15 = arith.constant 0 : index
    %21 = vector.load %arg3[%c0_14, %c0_15] : memref<16x32xf32, #tpu.memory_space<vmem>>, vector<16x32xf32>
    %22 = arith.subf %20, %21 : vector<16x32xf32>
    %cst_16 = arith.constant 2.000000e+00 : f32
    %23 = vector.broadcast %cst_16 : f32 to vector<16x32xf32>
    %24 = arith.mulf %23, %14 : vector<16x32xf32>
    %25 = arith.subf %24, %20 : vector<16x32xf32>
    %26 = arith.subf %25, %21 : vector<16x32xf32>
    %27 = arith.mulf %22, %26 : vector<16x32xf32>
    %28 = arith.mulf %27, %19 : vector<16x32xf32>
    %cst_17 = arith.constant dense<0.000000e+00> : vector<16xf32>
    %29 = vector.multi_reduction <add>, %28, %cst_17 [1] : vector<16x32xf32> to vector<16xf32>
    %30 = vector.shape_cast %29 : vector<16xf32> to vector<16x1xf32>
    %c16_i32 = arith.constant 16 : i32
    %31 = arith.muli %arg0, %c16_i32 : i32
    %32 = tpu.iota {dimensions = array<i32: 0>} : vector<16x1xi32>
    %33 = vector.broadcast %31 : i32 to vector<16x1xi32>
    %34 = arith.addi %33, %32 : vector<16x1xi32>
    %c8_i32 = arith.constant 8 : i32
    %35 = vector.broadcast %c8_i32 : i32 to vector<16x1xi32>
    %36 = arith.cmpi slt, %34, %35 : vector<16x1xi32>
    %cst_18 = arith.constant 0.000000e+00 : f32
    %37 = vector.broadcast %cst_18 : f32 to vector<16x1xf32>
    %38 = arith.select %36, %30, %37 : vector<16x1xi1>, vector<16x1xf32>
    %39 = vector.shape_cast %38 : vector<16x1xf32> to vector<1x16x1xf32>
    %cst_19 = arith.constant dense<0.000000e+00> : vector<1xf32>
    %40 = vector.multi_reduction <add>, %39, %cst_19 [1, 2] : vector<1x16x1xf32> to vector<1xf32>
    %41 = vector.shape_cast %40 : vector<1xf32> to vector<1x1x1xf32>
    %42 = vector.extract %41[0, 0, 0] : f32 from vector<1x1x1xf32>
    %43 = vector.broadcast %42 : f32 to vector<1x8x128xf32>
    %c0_20 = arith.constant 0 : index
    %c0_21 = arith.constant 0 : index
    %c0_22 = arith.constant 0 : index
    %44 = vector.load %arg8[%c0_20, %c0_21, %c0_22] : memref<1x8x128xf32, #tpu.memory_space<vmem>>, vector<1x8x128xf32>
    tpu.vector_store %arg8[%c0_20, %c0_21, %c0_22], %43 {strides = array<i32>} : memref<1x8x128xf32, #tpu.memory_space<vmem>>, vector<1x8x128xf32>,
    return
  }
  func.func @transform_0(%arg0: i32) -> (i32, i32) {
    %c0_i32 = arith.constant 0 : i32
    %c0_i32_0 = arith.constant 0 : i32
    return %arg0, %c0_i32 : i32, i32
  }
  func.func @transform_1(%arg0: i32) -> (i32, i32) {
    %c0_i32 = arith.constant 0 : i32
    %c0_i32_0 = arith.constant 0 : i32
    return %arg0, %c0_i32 : i32, i32
  }
  func.func @transform_2(%arg0: i32) -> (i32, i32) {
    %c0_i32 = arith.constant 0 : i32
    %c0_i32_0 = arith.constant 0 : i32
    return %arg0, %c0_i32 : i32, i32
  }
  func.func @transform_3(%arg0: i32) -> (i32, i32) {
    %c0_i32 = arith.constant 0 : i32
    %c0_i32_0 = arith.constant 0 : i32
    %c0_i32_1 = arith.constant 0 : i32
    return %c0_i32, %c0_i32_0 : i32, i32
  }
  func.func @transform_4(%arg0: i32) -> (i32, i32) {
    %c0_i32 = arith.constant 0 : i32
    %c0_i32_0 = arith.constant 0 : i32
    %c0_i32_1 = arith.constant 0 : i32
    return %c0_i32, %c0_i32_0 : i32, i32
  }
  func.func @transform_5(%arg0: i32) -> (i32, i32) {
    %c0_i32 = arith.constant 0 : i32
    %c0_i32_0 = arith.constant 0 : i32
    %c0_i32_1 = arith.constant 0 : i32
    return %c0_i32, %c0_i32_0 : i32, i32
  }
  func.func @transform_6(%arg0: i32) -> (i32, i32) {
    %c0_i32 = arith.constant 0 : i32
    %c0_i32_0 = arith.constant 0 : i32
    %c0_i32_1 = arith.constant 0 : i32
    return %c0_i32, %c0_i32_0 : i32, i32
  }
  func.func @transform_7(%arg0: i32) -> (i32, i32, i32) {
    %c0_i32 = arith.constant 0 : i32
    %c0_i32_0 = arith.constant 0 : i32
    %c0_i32_1 = arith.constant 0 : i32
    return %arg0, %c0_i32, %c0_i32_0 : i32, i32, i32
  }
}

</mosaic_0001>

<llo_original>
// kernel: club_forward.1
$region0: #{club_forward.1}
  #allocation0 [shape = 'u32[]', space=smem, size = 0x4, offset = 0x4, fixed_abs, tag = 'smem constant byte address 0x4 - core index']
  #allocation1 [shape = 'u32[72,128]{1,0:T(1,128)}', space=vmem, size = 0x9000, scoped, tag = 'internal scratch']
  %s0 = inlined_call_operand.vmem [shape: bf16[16,32], index: 0, kind: input, shape index: {}]
  %s1 = inlined_call_operand.vmem [shape: f32[16,32], index: 1, kind: input, shape index: {}]
  %s2 = inlined_call_operand.vmem [shape: f32[16,32], index: 2, kind: input, shape index: {}]
  %s3 = inlined_call_operand.vmem [shape: bf16[32,64], index: 3, kind: input, shape index: {}]
  %s4 = inlined_call_operand.vmem [shape: f32[1,64], index: 4, kind: input, shape index: {}]
  %s5 = inlined_call_operand.vmem [shape: bf16[64,64], index: 5, kind: input, shape index: {}]
  %s6 = inlined_call_operand.vmem [shape: f32[1,64], index: 6, kind: input, shape index: {}]
  %s7 = inlined_call_operand.vmem [shape: f32[1,8,128], index: 7, kind: output, shape index: {}]
  %s8 = sld [smem:[#allocation0]]
  $region38: #{club_forward.1} parent=0
    _
  %s10 = ssub.s32 1, %s8
  %s11 = scalar_select 0, %s10, %s8
  // Predicated region
  $region2: #{club_forward.1} parent=0 // pred_check
    _
  $region3: #{club_forward.1} parent=0 // pred_check_branch
    %13 = sbr.rel (0) target = $region5
  $region4: #{club_forward.1} parent=0 // pred_region
    _
  $region5: #{club_forward.1} parent=0 // pred_fallthru
    _
  // Predicated region
  $region6: #{club_forward.1} parent=0 // pred_check
    _
  $region7: #{club_forward.1} parent=0 // pred_check_branch
    %15 = sbr.rel (0) target = $region9
  $region8: #{club_forward.1} parent=0 // pred_region
    _
  $region9: #{club_forward.1} parent=0 // pred_fallthru
    _
  // Predicated region
  $region10: #{club_forward.1} parent=0 // pred_check
    _
  $region11: #{club_forward.1} parent=0 // pred_check_branch
    %17 = sbr.rel (0) target = $region13
  $region12: #{club_forward.1} parent=0 // pred_region
    _
  $region13: #{club_forward.1} parent=0 // pred_fallthru
    _
  // Predicated region
  $region14: #{club_forward.1} parent=0 // pred_check
    _
  $region15: #{club_forward.1} parent=0 // pred_check_branch
    %19 = sbr.rel (0) target = $region17
  $region16: #{club_forward.1} parent=0 // pred_region
    _
  $region17: #{club_forward.1} parent=0 // pred_fallthru
    _
  // Predicated region
  $region18: #{club_forward.1} parent=0 // pred_check
    _
  $region19: #{club_forward.1} parent=0 // pred_check_branch
    %21 = sbr.rel (0) target = $region21
  $region20: #{club_forward.1} parent=0 // pred_region
    _
  $region21: #{club_forward.1} parent=0 // pred_fallthru
    _
  // Predicated region
  $region22: #{club_forward.1} parent=0 // pred_check
    _
  $region23: #{club_forward.1} parent=0 // pred_check_branch
    %23 = sbr.rel (0) target = $region25
  $region24: #{club_forward.1} parent=0 // pred_region
    _
  $region25: #{club_forward.1} parent=0 // pred_fallthru
    _
  // Predicated region
  $region26: #{club_forward.1} parent=0 // pred_check
    _
  $region27: #{club_forward.1} parent=0 // pred_check_branch
    %25 = sbr.rel (0) target = $region29
  $region28: #{club_forward.1} parent=0 // pred_region
    _
  $region29: #{club_forward.1} parent=0 // pred_fallthru
    _
  %v27 = vld [vmem:[%s0] sm:$0xf]
  %v28 = vld [vmem:[%s0 + $0x4] sm:$0xf]
  %v29 = vld [vmem:[%s3] sm:$0xf]
  %v30 = vld [vmem:[%s3 + $0x4] sm:$0xf]
  %v31 = vld [vmem:[%s3 + $0x8] sm:$0xf]
  %v32 = vld [vmem:[%s3 + $0xc] sm:$0xf]
  %v33 = vld [vmem:[%s4] sm:$0x1]
  %v35 = vperm.slane %v33, 0
  %v39 = vunpack.c.l.b16 %v27
  %v40 = vunpack.c.l.b16 %v28
  %v41 = vpack.c.b16 %v40, %v39
  %v46 = vunpack.c.l.b16 %v29
  %v47 = vunpack.c.l.b16 %v30
  %v48 = vunpack.c.l.b16 %v31
  %v49 = vunpack.c.l.b16 %v32
  %v50 = vpack.c.b16 %v47, %v46
  %v51 = vpack.c.b16 %v49, %v48
  %vm54 = vcmask 261120
  %v56 = vsel %vm54, %v41, 0
  %58 = vmatpush.bf16.msra.mxu0 0
  %59 = vmatpush.bf16.msra.mxu0 0
  %60 = vmatpush.bf16.msra.mxu0 0
  %61 = vmatpush.bf16.msra.mxu0 0
  %62 = vmatpush.bf16.msra.mxu0 0
  %63 = vmatpush.bf16.msra.mxu0 0
  %64 = vmatpush.bf16.msra.mxu0 %v51
  %65 = vmatpush.bf16.msra.mxu0 %v50
  %66 = vmatmul.bf16.gmra.mxu0 %v56
  %v67 = vpop.f32.mrf.mxu0
  %v68 = vadd.f32 %v35, %v67
  %v69 = vpop.f32.mrf.mxu0
  %v70 = vadd.f32 %v35, %v69
  %71 = vdwg.mxu0
  %v72 = vmax.f32 %v68, 0.0
  %v73 = vmax.f32 %v70, 0.0
  %v74 = vpack.c.bf16 %v73, %v72
  %v75 = vld [vmem:[%s5] sm:$0xf]
  %v76 = vld [vmem:[%s5 + $0x4] sm:$0xf]
  %v77 = vld [vmem:[%s5 + $0x8] sm:$0xf]
  %v78 = vld [vmem:[%s5 + $0xc] sm:$0xf]
  %v79 = vld [vmem:[%s5 + $0x10] sm:$0xf]
  %v80 = vld [vmem:[%s5 + $0x14] sm:$0xf]
  %v81 = vld [vmem:[%s5 + $0x18] sm:$0xf]
  %v82 = vld [vmem:[%s5 + $0x1c] sm:$0xf]
  %v83 = vld [vmem:[%s6] sm:$0x1]
  %v85 = vperm.slane %v83, 0
  %v95 = vunpack.c.l.b16 %v75
  %v96 = vunpack.c.l.b16 %v76
  %v97 = vunpack.c.l.b16 %v77
  %v98 = vunpack.c.l.b16 %v78
  %v99 = vunpack.c.l.b16 %v79
  %v100 = vunpack.c.l.b16 %v80
  %v101 = vunpack.c.l.b16 %v81
  %v102 = vunpack.c.l.b16 %v82
  %v103 = vpack.c.b16 %v96, %v95
  %v104 = vpack.c.b16 %v98, %v97
  %v105 = vpack.c.b16 %v100, %v99
  %v106 = vpack.c.b16 %v102, %v101
  %vm111 = vcmask 523264
  %v113 = vsel %vm111, %v74, 0
  %115 = vmatpush.bf16.msra.mxu0 0
  %116 = vmatpush.bf16.msra.mxu0 0
  %117 = vmatpush.bf16.msra.mxu0 0
  %118 = vmatpush.bf16.msra.mxu0 0
  %119 = vmatpush.bf16.msra.mxu0 %v106
  %120 = vmatpush.bf16.msra.mxu0 %v105
  %121 = vmatpush.bf16.msra.mxu0 %v104
  %122 = vmatpush.bf16.msra.mxu0 %v103
  %123 = vmatmul.bf16.gmra.mxu0 %v113
  %v124 = vpop.f32.mrf.mxu0
  %v125 = vadd.f32 %v85, %v124
  %v126 = vpop.f32.mrf.mxu0
  %v127 = vadd.f32 %v85, %v126
  %128 = vdwg.mxu0
  %v129 = vtanh.pop %v125
  %v130 = vtanh.pop %v127
  %v131 = vsub.f32 0.0, %v129
  %v132 = vsub.f32 0.0, %v130
  %v133 = vmul.f32 %v131, 1.442695
  %v134 = vpow.pop %v133
  %v135 = vmul.f32 %v132, 1.442695
  %v136 = vpow.pop %v135
  %v137 = vld [vmem:[%s1] sm:$0xff]
  %v138 = vld [vmem:[%s1 + $0x8] sm:$0xff]
  %v139 = vld [vmem:[%s2] sm:$0xff]
  %v140 = vld [vmem:[%s2 + $0x8] sm:$0xff]
  %v141 = vsub.f32 %v137, %v139
  %v142 = vsub.f32 %v138, %v140
  %v143 = vmul.f32 %v125, 2.0
  %v144 = vmul.f32 %v127, 2.0
  %v145 = vsub.f32 %v143, %v137
  %v146 = vsub.f32 %v144, %v138
  %v147 = vsub.f32 %v145, %v139
  %v148 = vsub.f32 %v146, %v140
  %v149 = vmul.f32 %v141, %v147
  %v150 = vmul.f32 %v142, %v148
  %153 = vrot.lane.b32.xlu0 %v134, 96
  %v154 = vpop.permute.xlu0 %153
  %155 = vrot.lane.b32.xlu0 %v136, 96
  %v156 = vpop.permute.xlu0 %155
  %v159 = vmul.f32 %v149, %v154
  %v160 = vmul.f32 %v150, %v156
  %v161 = vsel %vm54, %v159, 0.0
  %162 = vadd.xlane.f32.xlu0 %v161
  %v163 = vpop.xlane.xlu0 %162
  %v164 = vsel %vm54, %v160, 0.0
  %165 = vadd.xlane.f32.xlu0 %v164
  %v166 = vpop.xlane.xlu0 %165
  %s167 = smul.u32 0, 16
  %v168 = vlaneseq
  %v169 = vshrl.u32 %v168, 7
  %v170 = vadd.s32 %v169, 8
  %v171 = vstv %s167
  %v172 = vadd.s32 %v171, %v169
  %v173 = vadd.s32 %v171, %v170
  %vm174 = vcmp.lt.s32.totalorder %v172, 8
  %vm175 = vcmp.lt.s32.totalorder %v173, 8
  %v176 = vsel %vm174, %v163, 0.0
  %v177 = vsel %vm175, %v166, 0.0
  %vm178 = vcmask 7168
  %v179 = vsel %vm178, %v176, 0.0
  %v180 = vsel %vm178, %v177, 0.0
  %v181 = vadd.f32 %v179, %v180
  %182 = vadd.xlane.f32.xlu0 %v181
  %v183 = vpop.xlane.xlu0 %182
  %v184 = vrot.slane %v183, 4
  %v185 = vadd.f32 %v183, %v184
  %v186 = vrot.slane %v185, 2
  %v187 = vadd.f32 %v185, %v186
  %v188 = vrot.slane %v187, 1
  %v189 = vadd.f32 %v187, %v188
  %s190 = vtos %v189
  %v191 = vstv %s190
  %192 = vst [vmem:[%s7] sm:$0xff] %v191
  // Predicated region
  $region30: #{club_forward.1} parent=0 // pred_check
    _
  $region31: #{club_forward.1} parent=0 // pred_check_branch
    %194 = sbr.rel (0) target = $region33
  $region32: #{club_forward.1} parent=0 // pred_region
    _
  $region33: #{club_forward.1} parent=0 // pred_fallthru
    _
  // Predicated region
  $region34: #{club_forward.1} parent=0 // pred_check
    _
  $region35: #{club_forward.1} parent=0 // pred_check_branch
    %196 = sbr.rel (0) target = $region37
  $region36: #{club_forward.1} parent=0 // pred_region
    _
  $region37: #{club_forward.1} parent=0 // pred_fallthru
    _

</llo_original>
